<compile_context>
chip_gen: v5e
topology: v5e:2x2
jax: 0.10.0
libtpu: 0.0.40
codegen_flags: <defaults>
</compile_context>

<pallas_src>
import functools

import jax
import jax.numpy as jnp
from jax.experimental import pallas as pl
from jax.experimental.pallas import tpu as pltpu

_LANE = 128
_SUBLANE = 8


def _round_up(n, m):
    return ((n + m - 1) // m) * m


def _device_kind():
    try:
        return jax.devices()[0].device_kind.lower()
    except Exception:
        return ""


def _vmem_capacity_bytes():
    """Physical VMEM per TensorCore (best effort; conservative fallback)."""
    try:
        info = pltpu.get_tpu_info()
        for attr in ("vmem_capacity_bytes", "vmem_size_bytes", "vmem_bytes"):
            v = getattr(info, attr, None)
            if v:
                return int(v)
    except Exception:
        pass
    kind = _device_kind()
    if not kind or "v7" in kind or "7x" in kind:
        return 64 << 20          # v7x (or unknown): be conservative
    return 128 << 20             # v5e / v6e


# ---------------------------------------------------------------------------
# Kernels
# ---------------------------------------------------------------------------

def _resident_kernel(x_ref, w_ref, b_ref, o_ref, *, mxu_bf16):
    """Whole (pre-transposed, pre-cast) weight resident in VMEM; batch-only grid."""
    x = x_ref[...]                         # (block_b, E_pad)
    if mxu_bf16:
        x = x.astype(jnp.bfloat16)         # weight was pre-cast once in prepare()
    acc = jnp.dot(x, w_ref[...], preferred_element_type=jnp.float32)
    o_ref[...] = jnp.abs(acc + b_ref[...]).astype(o_ref.dtype)   # f32 bias + abs


def _tiled_kernel(x_ref, w_ref, b_ref, o_ref, acc_ref, *, mxu_bf16):
    """C/E-tiled path (weight too large for VMEM); grid = (B, C, E), E last."""
    k = pl.program_id(2)

    @pl.when(k == 0)
    def _():
        acc_ref[...] = jnp.zeros_like(acc_ref)

    x = x_ref[...]                         # (block_b, block_k)
    if mxu_bf16:
        x = x.astype(jnp.bfloat16)
    acc_ref[...] += jnp.dot(x, w_ref[...], preferred_element_type=jnp.float32)

    @pl.when(k == pl.num_programs(2) - 1)
    def _():
        o_ref[...] = jnp.abs(acc_ref[...] + b_ref[...]).astype(o_ref.dtype)


# ---------------------------------------------------------------------------
# Parameter prep (one-time, amortized across forward passes)
# ---------------------------------------------------------------------------

def prepare_image_encoder_params(weight, bias, *, mxu_bf16=False):
    """Transpose the PyTorch (C, E) weight to (E, C), zero-pad both dims to
    lane-dense multiples of 128, and optionally pre-cast the weight to bf16
    (halves weight DMA and VMEM; accumulation stays f32).  bf16 is a valid
    throughput mode on v5e/v6e/v7x alike."""
    C, E = weight.shape
    C_pad = _round_up(C, _LANE)
    E_pad = _round_up(E, _LANE)
    wT = jnp.pad(weight, ((0, C_pad - C), (0, E_pad - E))).T    # (E_pad, C_pad)
    if mxu_bf16:
        wT = wT.astype(jnp.bfloat16)
    b = jnp.pad(bias, (0, C_pad - C)).astype(jnp.float32).reshape(1, C_pad)
    return jnp.asarray(wT), b


# ---------------------------------------------------------------------------
# Forward wrapper
# ---------------------------------------------------------------------------

def image_encoder(x, wT_pad, b_pad, *, out_features, block_b=None,
                  block_c=None, block_k=None, out_dtype=None, force_tiled=False):
    """x: (B, E); wT_pad: (E_pad, C_pad); b_pad: (1, C_pad) from
    prepare_image_encoder_params.  Returns abs(x @ W^T + b), shape (B, out_features)."""
    B, E = x.shape
    E_pad, C_pad = wT_pad.shape
    mxu_bf16 = wT_pad.dtype == jnp.bfloat16
    out_dtype = x.dtype if out_dtype is None else out_dtype

    # Lane-pad x along E only when the layer width is not already lane-dense.
    if E != E_pad:
        x = jnp.pad(x, ((0, 0), (0, E_pad - E)))

    x_item = jnp.dtype(x.dtype).itemsize
    w_item = jnp.dtype(wT_pad.dtype).itemsize
    b_item = jnp.dtype(b_pad.dtype).itemsize
    o_item = jnp.dtype(out_dtype).itemsize

    weight_bytes = E_pad * C_pad * w_item          # single-buffered residency
    bias_bytes = C_pad * b_item

    vmem_budget = _vmem_capacity_bytes() - (12 << 20)   # headroom for compiler scratch

    def io_bytes(bb):   # double-buffered x and out blocks
        return 2 * bb * (E_pad * x_item + C_pad * o_item)

    # Batch tile: biggest legal tile that, with the resident weight, fits VMEM.
    sub = 16 if (mxu_bf16 and jnp.dtype(out_dtype) == jnp.bfloat16) else _SUBLANE
    if block_b is None:
        if B <= _LANE:
            block_b = _round_up(B, sub)
        else:
            kind = _device_kind()
            max_bb = 256 if ("v5" in kind or "v4" in kind) else 512
            block_b = max_bb
            while block_b > _LANE and (
                    weight_bytes + 2 * bias_bytes + io_bytes(block_b) > vmem_budget):
                block_b //= 2

    resident_fits = (weight_bytes + 2 * bias_bytes + io_bytes(block_b)) <= vmem_budget
    use_resident = resident_fits and not force_tiled
    flops = 2 * B * E_pad * C_pad

    if use_resident:
        vmem_limit = int(min(max(2 * weight_bytes + 2 * bias_bytes
                                 + io_bytes(block_b) + (2 << 20), 4 << 20),
                             vmem_budget))
        cost = pl.CostEstimate(
            flops=flops, transcendentals=0,
            bytes_accessed=(B * E_pad * x_item + weight_bytes + bias_bytes
                            + B * C_pad * o_item))

        def call(single_buffer):
            # Constant-index weight/bias: single buffer (no point double-buffering).
            const_kw = {"pipeline_mode": pl.Buffered(1)} if single_buffer else {}
            return pl.pallas_call(
                functools.partial(_resident_kernel, mxu_bf16=mxu_bf16),
                out_shape=jax.ShapeDtypeStruct((B, C_pad), out_dtype),
                grid_spec=pltpu.PrefetchScalarGridSpec(
                    num_scalar_prefetch=0,
                    grid=(pl.cdiv(B, block_b),),
                    in_specs=[
                        pl.BlockSpec((block_b, E_pad), lambda i: (i, 0)),
                        pl.BlockSpec((E_pad, C_pad), lambda i: (0, 0), **const_kw),
                        pl.BlockSpec((1, C_pad), lambda i: (0, 0), **const_kw),
                    ],
                    out_specs=pl.BlockSpec((block_b, C_pad), lambda i: (i, 0)),
                ),
                compiler_params=pltpu.CompilerParams(
                    dimension_semantics=("parallel",),   # pipeline batch; megacore-shard
                    vmem_limit_bytes=vmem_limit,
                ),
                cost_estimate=cost,
            )(x, wT_pad, b_pad)

        try:
            out = call(single_buffer=True)
        except Exception:
            # Fallback if this jax build rejects buffer_count=1 for constant blocks.
            out = call(single_buffer=False)
    else:
        # Weight does not fit VMEM: tile C ("parallel") and E ("arbitrary", last)
        # with an f32 accumulator scratch and pl.when init/finalize.
        block_c = min(256, C_pad) if block_c is None else block_c
        block_k = min(512, E_pad) if block_k is None else block_k

        vmem_needed = (2 * (block_b * block_k * x_item
                            + block_k * block_c * w_item
                            + block_c * b_item
                            + block_b * block_c * o_item)
                       + block_b * block_c * 4)
        vmem_limit = int(min(max(vmem_needed + (2 << 20), 4 << 20), vmem_budget))
        n_b = pl.cdiv(B, block_b)
        n_c = pl.cdiv(C_pad, block_c)
        n_k = pl.cdiv(E_pad, block_k)
        cost = pl.CostEstimate(
            flops=flops, transcendentals=0,
            bytes_accessed=(n_c * B * E_pad * x_item + n_b * weight_bytes
                            + bias_bytes + B * C_pad * o_item))

        out = pl.pallas_call(
            functools.partial(_tiled_kernel, mxu_bf16=mxu_bf16),
            out_shape=jax.ShapeDtypeStruct((B, C_pad), out_dtype),
            grid_spec=pltpu.PrefetchScalarGridSpec(
                num_scalar_prefetch=0,
                grid=(n_b, n_c, n_k),
                in_specs=[
                    pl.BlockSpec((block_b, block_k), lambda i, j, k: (i, k)),
                    pl.BlockSpec((block_k, block_c), lambda i, j, k: (k, j)),
                    pl.BlockSpec((1, block_c), lambda i, j, k: (0, j)),
                ],
                out_specs=pl.BlockSpec((block_b, block_c), lambda i, j, k: (i, j)),
                scratch_shapes=[pltpu.VMEM((block_b, block_c), jnp.float32)],
            ),
            compiler_params=pltpu.CompilerParams(
                dimension_semantics=("parallel", "parallel", "arbitrary"),
                vmem_limit_bytes=vmem_limit,
            ),
            cost_estimate=cost,
        )(x, wT_pad, b_pad)

    if out_features != C_pad:
        out = out[:, :out_features]
    return out


if __name__ == "__main__":
    EMBEDDING_SIZE = 32
    COMMON_SIZE = 16
    BATCH = 8

    key = jax.random.PRNGKey(0)
    kx, kw, kb = jax.random.split(key, 3)

    # Deterministic synthetic params (shapes match nn.Linear(EMBEDDING_SIZE, COMMON_SIZE)).
    x = jax.random.normal(kx, (BATCH, EMBEDDING_SIZE), dtype=jnp.float32)
    weight = jax.random.normal(kw, (COMMON_SIZE, EMBEDDING_SIZE), dtype=jnp.float32) * 0.1
    bias = jax.random.normal(kb, (COMMON_SIZE,), dtype=jnp.float32) * 0.1

    # Pure-JAX reference: abs(x @ W^T + b), same semantics as the PyTorch module.
    ref = jnp.abs(x @ weight.T + bias)

    # f32 path (exact semantics), resident-weight kernel.
    wT32, b32 = prepare_image_encoder_params(weight, bias, mxu_bf16=False)
    out = jax.block_until_ready(
        image_encoder(x, wT32, b32, out_features=COMMON_SIZE))
    assert out.shape == (BATCH, COMMON_SIZE)
    assert jnp.allclose(out, ref, atol=1e-5, rtol=1e-5), "f32 resident mismatch"

    # bf16 MXU-operand path (weight pre-cast once; f32 accumulate + f32 epilogue).
    wT16, b16 = prepare_image_encoder_params(weight, bias, mxu_bf16=True)
    out_bf16 = jax.block_until_ready(
        image_encoder(x, wT16, b16, out_features=COMMON_SIZE))
    assert out_bf16.shape == (BATCH, COMMON_SIZE)
    assert jnp.allclose(out_bf16, ref, atol=3e-2, rtol=3e-2), "bf16 mismatch"

    # C/E-tiled accumulator path (auto-selected when the weight exceeds VMEM;
    # forced here so it is exercised at demo sizes too).
    out_tiled = jax.block_until_ready(
        image_encoder(x, wT32, b32, out_features=COMMON_SIZE, force_tiled=True))
    assert out_tiled.shape == (BATCH, COMMON_SIZE)
    assert jnp.allclose(out_tiled, ref, atol=1e-5, rtol=1e-5), "tiled mismatch"

    print("KERNEL_OK")
</pallas_src>

<mosaic_0001>
module attributes {stable_mosaic.version = 11 : i64} {
  func.func @_resident_kernel(%arg0: i32, %arg1: memref<8x128xf32, #tpu.memory_space<vmem>>, %arg2: memref<128x128xf32, #tpu.memory_space<vmem>>, %arg3: memref<1x128xf32, #tpu.memory_space<vmem>>, %arg4: memref<8x128xf32, #tpu.memory_space<vmem>>) attributes {dimension_semantics = [#tpu.dimension_semantics<parallel>], iteration_bounds = array<i64: 1>, scalar_prefetch = 0 : i64, scratch_operands = 0 : i64, tpu.core_type = #tpu.core_type<tc>, window_params = [{transform_indices = @transform_0, window_bounds = array<i64: 8, 128>}, {pipeline_mode = #tpu.pipeline_mode<synchronous>, transform_indices = @transform_1, window_bounds = array<i64: 128, 128>}, {pipeline_mode = #tpu.pipeline_mode<synchronous>, transform_indices = @transform_2, window_bounds = array<i64: 1, 128>}, {transform_indices = @transform_3, window_bounds = array<i64: 8, 128>}]} {
    %c0 = arith.constant 0 : index
    %c0_0 = arith.constant 0 : index
    %0 = vector.load %arg1[%c0, %c0_0] : memref<8x128xf32, #tpu.memory_space<vmem>>, vector<8x128xf32>
    %c0_1 = arith.constant 0 : index
    %c0_2 = arith.constant 0 : index
    %1 = vector.load %arg2[%c0_1, %c0_2] : memref<128x128xf32, #tpu.memory_space<vmem>>, vector<128x128xf32>
    %cst = arith.constant dense<0.000000e+00> : vector<8x128xf32>
    %2 = tpu.matmul %0, %1, %cst {dimension_numbers = #tpu.dot_dimension_numbers<[1], [0], [0], [1], [0, 0, 1, 1], [], []>} : vector<8x128xf32>, vector<128x128xf32>, vector<8x128xf32> -> vector<8x128xf32>
    %c0_3 = arith.constant 0 : index
    %c0_4 = arith.constant 0 : index
    %3 = vector.load %arg3[%c0_3, %c0_4] : memref<1x128xf32, #tpu.memory_space<vmem>>, vector<1x128xf32>
    %4 = vector.broadcast %3 : vector<1x128xf32> to vector<8x128xf32>
    %5 = arith.addf %2, %4 : vector<8x128xf32>
    %6 = math.absf %5 : vector<8x128xf32>
    %c0_5 = arith.constant 0 : index
    %c0_6 = arith.constant 0 : index
    %7 = vector.load %arg4[%c0_5, %c0_6] : memref<8x128xf32, #tpu.memory_space<vmem>>, vector<8x128xf32>
    tpu.vector_store %arg4[%c0_5, %c0_6], %6 {strides = array<i32>} : memref<8x128xf32, #tpu.memory_space<vmem>>, vector<8x128xf32>,
    return
  }
  func.func @transform_0(%arg0: i32) -> (i32, i32) {
    %c0_i32 = arith.constant 0 : i32
    %c0_i32_0 = arith.constant 0 : i32
    return %arg0, %c0_i32 : i32, i32
  }
  func.func @transform_1(%arg0: i32) -> (i32, i32) {
    %c0_i32 = arith.constant 0 : i32
    %c0_i32_0 = arith.constant 0 : i32
    %c0_i32_1 = arith.constant 0 : i32
    return %c0_i32, %c0_i32_0 : i32, i32
  }
  func.func @transform_2(%arg0: i32) -> (i32, i32) {
    %c0_i32 = arith.constant 0 : i32
    %c0_i32_0 = arith.constant 0 : i32
    %c0_i32_1 = arith.constant 0 : i32
    return %c0_i32, %c0_i32_0 : i32, i32
  }
  func.func @transform_3(%arg0: i32) -> (i32, i32) {
    %c0_i32 = arith.constant 0 : i32
    %c0_i32_0 = arith.constant 0 : i32
    return %arg0, %c0_i32 : i32, i32
  }
}

module attributes {stable_mosaic.version = 11 : i64} {
  func.func @_resident_kernel(%arg0: i32, %arg1: memref<8x128xf32, #tpu.memory_space<vmem>>, %arg2: memref<128x128xf32, #tpu.memory_space<vmem>>, %arg3: memref<1x128xf32, #tpu.memory_space<vmem>>, %arg4: memref<8x128xf32, #tpu.memory_space<vmem>>) attributes {dimension_semantics = [#tpu.dimension_semantics<parallel>], iteration_bounds = array<i64: 1>, scalar_prefetch = 0 : i64, scratch_operands = 0 : i64, tpu.core_type = #tpu.core_type<tc>, window_params = [{transform_indices = @transform_0, window_bounds = array<i64: 8, 128>}, {pipeline_mode = #tpu.pipeline_mode<synchronous>, transform_indices = @transform_1, window_bounds = array<i64: 128, 128>}, {pipeline_mode = #tpu.pipeline_mode<synchronous>, transform_indices = @transform_2, window_bounds = array<i64: 1, 128>}, {transform_indices = @transform_3, window_bounds = array<i64: 8, 128>}]} {
    %c0 = arith.constant 0 : index
    %c0_0 = arith.constant 0 : index
    %0 = vector.load %arg1[%c0, %c0_0] : memref<8x128xf32, #tpu.memory_space<vmem>>, vector<8x128xf32>
    %c0_1 = arith.constant 0 : index
    %c0_2 = arith.constant 0 : index
    %1 = vector.load %arg2[%c0_1, %c0_2] : memref<128x128xf32, #tpu.memory_space<vmem>>, vector<128x128xf32>
    %cst = arith.constant dense<0.000000e+00> : vector<8x128xf32>
    %2 = tpu.matmul %0, %1, %cst {dimension_numbers = #tpu.dot_dimension_numbers<[1], [0], [0], [1], [0, 0, 1, 1], [], []>} : vector<8x128xf32>, vector<128x128xf32>, vector<8x128xf32> -> vector<8x128xf32>
    %c0_3 = arith.constant 0 : index
    %c0_4 = arith.constant 0 : index
    %3 = vector.load %arg3[%c0_3, %c0_4] : memref<1x128xf32, #tpu.memory_space<vmem>>, vector<1x128xf32>
    %4 = vector.broadcast %3 : vector<1x128xf32> to vector<8x128xf32>
    %5 = arith.addf %2, %4 : vector<8x128xf32>
    %6 = math.absf %5 : vector<8x128xf32>
    %c0_5 = arith.constant 0 : index
    %c0_6 = arith.constant 0 : index
    %7 = vector.load %arg4[%c0_5, %c0_6] : memref<8x128xf32, #tpu.memory_space<vmem>>, vector<8x128xf32>
    tpu.vector_store %arg4[%c0_5, %c0_6], %6 {strides = array<i32>} : memref<8x128xf32, #tpu.memory_space<vmem>>, vector<8x128xf32>,
    return
  }
  func.func @transform_0(%arg0: i32) -> (i32, i32) {
    %c0_i32 = arith.constant 0 : i32
    %c0_i32_0 = arith.constant 0 : i32
    return %arg0, %c0_i32 : i32, i32
  }
  func.func @transform_1(%arg0: i32) -> (i32, i32) {
    %c0_i32 = arith.constant 0 : i32
    %c0_i32_0 = arith.constant 0 : i32
    %c0_i32_1 = arith.constant 0 : i32
    return %c0_i32, %c0_i32_0 : i32, i32
  }
  func.func @transform_2(%arg0: i32) -> (i32, i32) {
    %c0_i32 = arith.constant 0 : i32
    %c0_i32_0 = arith.constant 0 : i32
    %c0_i32_1 = arith.constant 0 : i32
    return %c0_i32, %c0_i32_0 : i32, i32
  }
  func.func @transform_3(%arg0: i32) -> (i32, i32) {
    %c0_i32 = arith.constant 0 : i32
    %c0_i32_0 = arith.constant 0 : i32
    return %arg0, %c0_i32 : i32, i32
  }
}

</mosaic_0001>

<llo_original>
// kernel: tpu_custom_call.1
$region0: #{tpu_custom_call.1}
  #allocation0 [shape = 'u32[]', space=smem, size = 0x4, offset = 0x4, fixed_abs, tag = 'smem constant byte address 0x4 - core index']
  #allocation1 [shape = 'u32[72,128]{1,0:T(1,128)}', space=vmem, size = 0x9000, scoped, tag = 'internal scratch']
  %s0 = inlined_call_operand.hbm [shape: f32[8,128], index: 0, kind: input, shape index: {}]
  %s1 = inlined_call_operand.hbm [shape: f32[128,128], index: 1, kind: input, shape index: {}]
  %s2 = inlined_call_operand.vmem [shape: f32[1,128], index: 2, kind: input, shape index: {}]
  %s3 = inlined_call_operand.hbm [shape: f32[8,128], index: 3, kind: output, shape index: {}]
  %s4 = sld [smem:[#allocation0]]
  $region30: #{tpu_custom_call.1} parent=0
    _
  %s6 = ssub.s32 1, %s4
  %s7 = scalar_select 0, %s6, %s4
  $region1: #{tpu_custom_call.1} parent=0
    #allocation2 [shape = 'u8[4096]{0}', space=vmem, size = 0x1000, scoped, tag = 'input window, operand 0, single buffered']
    #allocation3 [shape = 's32[1]{0}', space=sflag, size = 0x4, scoped, tag = 'scoped memory for tpu_custom_call.1']
    #allocation4 [shape = 's32[1]{0}', space=sflag, size = 0x4, scoped, tag = 'scoped memory for tpu_custom_call.1']
    #allocation5 [shape = 'u8[65536]{0}', space=vmem, size = 0x10000, scoped, tag = 'input window, operand 1, single buffered']
    #allocation6 [shape = 's32[1]{0}', space=sflag, size = 0x4, scoped, tag = 'scoped memory for tpu_custom_call.1']
    #allocation7 [shape = 'u8[4096]{0}', space=vmem, size = 0x1000, scoped, tag = 'output window, operand 0, single buffered']
    %8 = vsyncpa [#allocation3], 0
    %9 = vsyncpa [#allocation6], 0
    %10 = vsyncpa [#allocation4], 0
    // Predicated region
    $region2: #{tpu_custom_call.1} parent=1 // pred_check
      _
    $region3: #{tpu_custom_call.1} parent=1 // pred_check_branch
      %12 = sbr.rel (0) target = $region5
    $region4: #{tpu_custom_call.1} parent=1 // pred_region
      %14 = vsyncadd [#allocation3], 0
      %s16 = sshll.u32 %s0, 4
      %s17 = int_to_ptr.hbm [resolvable:$true] %s16
      %s18 = sshll.u32 [#allocation2], 4
      %s19 = int_to_ptr.vmem [resolvable:$true] %s18
      %21 = dma.hbm_to_vmem [thread:$0]  %s17, 128, %s19, [#allocation3]
    $region5: #{tpu_custom_call.1} parent=1 // pred_fallthru
      _
    // Predicated region
    $region6: #{tpu_custom_call.1} parent=1 // pred_check
      _
    $region7: #{tpu_custom_call.1} parent=1 // pred_check_branch
      %23 = sbr.rel (0) target = $region9
    $region8: #{tpu_custom_call.1} parent=1 // pred_region
      %25 = vsyncadd [#allocation6], 0
      %s26 = sshll.u32 %s1, 4
      %s27 = int_to_ptr.hbm [resolvable:$true] %s26
      %s28 = sshll.u32 [#allocation5], 4
      %s29 = int_to_ptr.vmem [resolvable:$true] %s28
      %34 = dma.hbm_to_vmem [thread:$0]  %s27, 2048, %s29, [#allocation6], 128, 128, 8
    $region9: #{tpu_custom_call.1} parent=1 // pred_fallthru
      _
    // Predicated region
    $region10: #{tpu_custom_call.1} parent=1 // pred_check
      _
    $region11: #{tpu_custom_call.1} parent=1 // pred_check_branch
      %36 = sbr.rel (0) target = $region13
    $region12: #{tpu_custom_call.1} parent=1 // pred_region
      _
    $region13: #{tpu_custom_call.1} parent=1 // pred_fallthru
      _
    // Predicated region
    $region14: #{tpu_custom_call.1} parent=1 // pred_check
      _
    $region15: #{tpu_custom_call.1} parent=1 // pred_check_branch
      %38 = sbr.rel (0) target = $region17
    $region16: #{tpu_custom_call.1} parent=1 // pred_region
      %40 = dma.done [#allocation3], 128
    $region17: #{tpu_custom_call.1} parent=1 // pred_fallthru
      _
    // Predicated region
    $region18: #{tpu_custom_call.1} parent=1 // pred_check
      _
    $region19: #{tpu_custom_call.1} parent=1 // pred_check_branch
      %42 = sbr.rel (0) target = $region21
    $region20: #{tpu_custom_call.1} parent=1 // pred_region
      %44 = dma.done [#allocation6], 2048
    $region21: #{tpu_custom_call.1} parent=1 // pred_fallthru
      _
    %v45 = vld [vmem:[#allocation2] sm:$0xff]
    %v46 = vld [vmem:[#allocation5] sm:$0xff]
    %v47 = vld [vmem:[#allocation5 + $0x8] sm:$0xff]
    %v48 = vld [vmem:[#allocation5 + $0x10] sm:$0xff]
    %v49 = vld [vmem:[#allocation5 + $0x18] sm:$0xff]
    %v50 = vld [vmem:[#allocation5 + $0x20] sm:$0xff]
    %v51 = vld [vmem:[#allocation5 + $0x28] sm:$0xff]
    %v52 = vld [vmem:[#allocation5 + $0x30] sm:$0xff]
    %v53 = vld [vmem:[#allocation5 + $0x38] sm:$0xff]
    %v54 = vld [vmem:[#allocation5 + $0x40] sm:$0xff]
    %v55 = vld [vmem:[#allocation5 + $0x48] sm:$0xff]
    %v56 = vld [vmem:[#allocation5 + $0x50] sm:$0xff]
    %v57 = vld [vmem:[#allocation5 + $0x58] sm:$0xff]
    %v58 = vld [vmem:[#allocation5 + $0x60] sm:$0xff]
    %v59 = vld [vmem:[#allocation5 + $0x68] sm:$0xff]
    %v60 = vld [vmem:[#allocation5 + $0x70] sm:$0xff]
    %v61 = vld [vmem:[#allocation5 + $0x78] sm:$0xff]
    %v62 = vld [vmem:[%s2] sm:$0x1]
    %v64 = vperm.slane %v62, 0
    %66 = vmatpush.msra.mxu0 %v61
    %67 = vmatpush.msra.mxu0 %v60
    %68 = vmatpush.msra.mxu0 %v59
    %69 = vmatpush.msra.mxu0 %v58
    %70 = vmatpush.msra.mxu0 %v57
    %71 = vmatpush.msra.mxu0 %v56
    %72 = vmatpush.msra.mxu0 %v55
    %73 = vmatpush.msra.mxu0 %v54
    %74 = vmatpush.msra.mxu0 %v53
    %75 = vmatpush.msra.mxu0 %v52
    %76 = vmatpush.msra.mxu0 %v51
    %77 = vmatpush.msra.mxu0 %v50
    %78 = vmatpush.msra.mxu0 %v49
    %79 = vmatpush.msra.mxu0 %v48
    %80 = vmatpush.msra.mxu0 %v47
    %81 = vmatpush.msra.mxu0 %v46
    %82 = vmatmul.f32.gmra.mxu0 %v45
    %v83 = vpop.f32.mrf.mxu0
    %v84 = vadd.f32 %v64, %v83
    %85 = vdwg.mxu0
    %v86 = vand.u32 2147483647, %v84
    %87 = vst [vmem:[#allocation7] sm:$0xff] %v86
    // Predicated region
    $region22: #{tpu_custom_call.1} parent=1 // pred_check
      _
    $region23: #{tpu_custom_call.1} parent=1 // pred_check_branch
      %89 = sbr.rel (0) target = $region25
    $region24: #{tpu_custom_call.1} parent=1 // pred_region
      %91 = vsyncadd [#allocation4], 0
      %s93 = sshll.u32 [#allocation7], 4
      %s94 = int_to_ptr.vmem [resolvable:$true] %s93
      %s95 = sshll.u32 %s3, 4
      %s96 = int_to_ptr.hbm [resolvable:$true] %s95
      %98 = dma.vmem_to_hbm [thread:$0]  %s94, 128, %s96, [#allocation4]
    $region25: #{tpu_custom_call.1} parent=1 // pred_fallthru
      _
    // Predicated region
    $region26: #{tpu_custom_call.1} parent=1 // pred_check
      _
    $region27: #{tpu_custom_call.1} parent=1 // pred_check_branch
      %100 = sbr.rel (0) target = $region29
    $region28: #{tpu_custom_call.1} parent=1 // pred_region
      %102 = dma.done [#allocation4], 128
    $region29: #{tpu_custom_call.1} parent=1 // pred_fallthru
      _
    %103 = vsyncpa [#allocation3], 1
    %104 = vsyncpa [#allocation6], 1
    %105 = vsyncpa [#allocation4], 1

// kernel: tpu_custom_call.1
$region0: #{tpu_custom_call.1}
  #allocation0 [shape = 'u32[]', space=smem, size = 0x4, offset = 0x4, fixed_abs, tag = 'smem constant byte address 0x4 - core index']
  #allocation1 [shape = 'u32[72,128]{1,0:T(1,128)}', space=vmem, size = 0x9000, scoped, tag = 'internal scratch']
  %s0 = inlined_call_operand.hbm [shape: f32[8,128], index: 0, kind: input, shape index: {}]
  %s1 = inlined_call_operand.hbm [shape: f32[128,128], index: 1, kind: input, shape index: {}]
  %s2 = inlined_call_operand.vmem [shape: f32[1,128], index: 2, kind: input, shape index: {}]
  %s3 = inlined_call_operand.hbm [shape: f32[8,128], index: 3, kind: output, shape index: {}]
  %s4 = sld [smem:[#allocation0]]
  $region30: #{tpu_custom_call.1} parent=0
    _
  %s6 = ssub.s32 1, %s4
  %s7 = scalar_select 0, %s6, %s4
  $region1: #{tpu_custom_call.1} parent=0
    #allocation2 [shape = 'u8[4096]{0}', space=vmem, size = 0x1000, scoped, tag = 'input window, operand 0, single buffered']
    #allocation3 [shape = 's32[1]{0}', space=sflag, size = 0x4, scoped, tag = 'scoped memory for tpu_custom_call.1']
    #allocation4 [shape = 's32[1]{0}', space=sflag, size = 0x4, scoped, tag = 'scoped memory for tpu_custom_call.1']
    #allocation5 [shape = 'u8[65536]{0}', space=vmem, size = 0x10000, scoped, tag = 'input window, operand 1, single buffered']
    #allocation6 [shape = 's32[1]{0}', space=sflag, size = 0x4, scoped, tag = 'scoped memory for tpu_custom_call.1']
    #allocation7 [shape = 'u8[4096]{0}', space=vmem, size = 0x1000, scoped, tag = 'output window, operand 0, single buffered']
    %8 = vsyncpa [#allocation3], 0
    %9 = vsyncpa [#allocation6], 0
    %10 = vsyncpa [#allocation4], 0
    // Predicated region
    $region2: #{tpu_custom_call.1} parent=1 // pred_check
      _
    $region3: #{tpu_custom_call.1} parent=1 // pred_check_branch
      %12 = sbr.rel (0) target = $region5
    $region4: #{tpu_custom_call.1} parent=1 // pred_region
      %14 = vsyncadd [#allocation3], 0
      %s16 = sshll.u32 %s0, 4
      %s17 = int_to_ptr.hbm [resolvable:$true] %s16
      %s18 = sshll.u32 [#allocation2], 4
      %s19 = int_to_ptr.vmem [resolvable:$true] %s18
      %21 = dma.hbm_to_vmem [thread:$0]  %s17, 128, %s19, [#allocation3]
    $region5: #{tpu_custom_call.1} parent=1 // pred_fallthru
      _
    // Predicated region
    $region6: #{tpu_custom_call.1} parent=1 // pred_check
      _
    $region7: #{tpu_custom_call.1} parent=1 // pred_check_branch
      %23 = sbr.rel (0) target = $region9
    $region8: #{tpu_custom_call.1} parent=1 // pred_region
      %25 = vsyncadd [#allocation6], 0
      %s26 = sshll.u32 %s1, 4
      %s27 = int_to_ptr.hbm [resolvable:$true] %s26
      %s28 = sshll.u32 [#allocation5], 4
      %s29 = int_to_ptr.vmem [resolvable:$true] %s28
      %34 = dma.hbm_to_vmem [thread:$0]  %s27, 2048, %s29, [#allocation6], 128, 128, 8
    $region9: #{tpu_custom_call.1} parent=1 // pred_fallthru
      _
    // Predicated region
    $region10: #{tpu_custom_call.1} parent=1 // pred_check
      _
    $region11: #{tpu_custom_call.1} parent=1 // pred_check_branch
      %36 = sbr.rel (0) target = $region13
    $region12: #{tpu_custom_call.1} parent=1 // pred_region
      _
    $region13: #{tpu_custom_call.1} parent=1 // pred_fallthru
      _
    // Predicated region
    $region14: #{tpu_custom_call.1} parent=1 // pred_check
      _
    $region15: #{tpu_custom_call.1} parent=1 // pred_check_branch
      %38 = sbr.rel (0) target = $region17
    $region16: #{tpu_custom_call.1} parent=1 // pred_region
      %40 = dma.done [#allocation3], 128
    $region17: #{tpu_custom_call.1} parent=1 // pred_fallthru
      _
    // Predicated region
    $region18: #{tpu_custom_call.1} parent=1 // pred_check
      _
    $region19: #{tpu_custom_call.1} parent=1 // pred_check_branch
      %42 = sbr.rel (0) target = $region21
    $region20: #{tpu_custom_call.1} parent=1 // pred_region
      %44 = dma.done [#allocation6], 2048
    $region21: #{tpu_custom_call.1} parent=1 // pred_fallthru
      _
    %v45 = vld [vmem:[#allocation2] sm:$0xff]
    %v46 = vld [vmem:[#allocation5] sm:$0xff]
    %v47 = vld [vmem:[#allocation5 + $0x8] sm:$0xff]
    %v48 = vld [vmem:[#allocation5 + $0x10] sm:$0xff]
    %v49 = vld [vmem:[#allocation5 + $0x18] sm:$0xff]
    %v50 = vld [vmem:[#allocation5 + $0x20] sm:$0xff]
    %v51 = vld [vmem:[#allocation5 + $0x28] sm:$0xff]
    %v52 = vld [vmem:[#allocation5 + $0x30] sm:$0xff]
    %v53 = vld [vmem:[#allocation5 + $0x38] sm:$0xff]
    %v54 = vld [vmem:[#allocation5 + $0x40] sm:$0xff]
    %v55 = vld [vmem:[#allocation5 + $0x48] sm:$0xff]
    %v56 = vld [vmem:[#allocation5 + $0x50] sm:$0xff]
    %v57 = vld [vmem:[#allocation5 + $0x58] sm:$0xff]
    %v58 = vld [vmem:[#allocation5 + $0x60] sm:$0xff]
    %v59 = vld [vmem:[#allocation5 + $0x68] sm:$0xff]
    %v60 = vld [vmem:[#allocation5 + $0x70] sm:$0xff]
    %v61 = vld [vmem:[#allocation5 + $0x78] sm:$0xff]
    %v62 = vld [vmem:[%s2] sm:$0x1]
    %v64 = vperm.slane %v62, 0
    %66 = vmatpush.msra.mxu0 %v61
    %67 = vmatpush.msra.mxu0 %v60
    %68 = vmatpush.msra.mxu0 %v59
    %69 = vmatpush.msra.mxu0 %v58
    %70 = vmatpush.msra.mxu0 %v57
    %71 = vmatpush.msra.mxu0 %v56
    %72 = vmatpush.msra.mxu0 %v55
    %73 = vmatpush.msra.mxu0 %v54
    %74 = vmatpush.msra.mxu0 %v53
    %75 = vmatpush.msra.mxu0 %v52
    %76 = vmatpush.msra.mxu0 %v51
    %77 = vmatpush.msra.mxu0 %v50
    %78 = vmatpush.msra.mxu0 %v49
    %79 = vmatpush.msra.mxu0 %v48
    %80 = vmatpush.msra.mxu0 %v47
    %81 = vmatpush.msra.mxu0 %v46
    %82 = vmatmul.f32.gmra.mxu0 %v45
    %v83 = vpop.f32.mrf.mxu0
    %v84 = vadd.f32 %v64, %v83
    %85 = vdwg.mxu0
    %v86 = vand.u32 2147483647, %v84
    %87 = vst [vmem:[#allocation7] sm:$0xff] %v86
    // Predicated region
    $region22: #{tpu_custom_call.1} parent=1 // pred_check
      _
    $region23: #{tpu_custom_call.1} parent=1 // pred_check_branch
      %89 = sbr.rel (0) target = $region25
    $region24: #{tpu_custom_call.1} parent=1 // pred_region
      %91 = vsyncadd [#allocation4], 0
      %s93 = sshll.u32 [#allocation7], 4
      %s94 = int_to_ptr.vmem [resolvable:$true] %s93
      %s95 = sshll.u32 %s3, 4
      %s96 = int_to_ptr.hbm [resolvable:$true] %s95
      %98 = dma.vmem_to_hbm [thread:$0]  %s94, 128, %s96, [#allocation4]
    $region25: #{tpu_custom_call.1} parent=1 // pred_fallthru
      _
    // Predicated region
    $region26: #{tpu_custom_call.1} parent=1 // pred_check
      _
    $region27: #{tpu_custom_call.1} parent=1 // pred_check_branch
      %100 = sbr.rel (0) target = $region29
    $region28: #{tpu_custom_call.1} parent=1 // pred_region
      %102 = dma.done [#allocation4], 128
    $region29: #{tpu_custom_call.1} parent=1 // pred_fallthru
      _
    %103 = vsyncpa [#allocation3], 1
    %104 = vsyncpa [#allocation6], 1
    %105 = vsyncpa [#allocation4], 1

</llo_original>
